<compile_context>
chip_gen: v5e
topology: v5e:2x2
jax: 0.10.0
libtpu: 0.0.40
codegen_flags: <defaults>
</compile_context>

<pallas_src>
import jax
import jax.numpy as jnp
from jax.experimental import pallas as pl
from jax.experimental.pallas import tpu as pltpu

_SUBLANES = 8
_LANES = 128


def _lstm_classifier_kernel(x_ref, w_ih_ref, w_hh_ref, w_out_ref, b_out_ref,
                            out_ref, hid_ref):
    # Static shapes derived at trace time.
    H = w_hh_ref.shape[0]
    Bp = hid_ref.shape[0]          # batch padded to a full f32 sublane tile
    Hpad = hid_ref.shape[1]        # lane-dense hidden output width
    T = x_ref.shape[0] // Bp

    # --- Hoisted input projection: ONE big matmul, no time dependence. -------
    # x_ref is (T*Bp, I) time-major (row t*Bp + b); gx is (T*Bp, 4H) in f32.
    gx = jnp.dot(x_ref[...], w_ih_ref[...], preferred_element_type=jnp.float32)

    w_hh = w_hh_ref[...]           # (H, 4H) f32, resident for the recurrence

    # --- Serial recurrence, fully unrolled (T is small & static). ------------
    h = jnp.zeros((Bp, H), jnp.float32)
    c = jnp.zeros((Bp, H), jnp.float32)
    for t in range(T):
        # Per-step critical path: sublane-aligned whole-tile slice of gx, one
        # small f32 MXU dot, ONE full-width sigmoid, VPU elementwise.
        gates = gx[t * Bp:(t + 1) * Bp, :] + jnp.dot(
            h, w_hh, preferred_element_type=jnp.float32)

        # g-gate columns were pre-scaled by 2 in the wrapper, so a single EUP
        # pass suffices: tanh(x) = 2*sigmoid(2x) - 1 (VPU fixup).
        s = jax.nn.sigmoid(gates)
        i_g = s[:, 0 * H:1 * H]               # input gate
        f_g = s[:, 1 * H:2 * H]               # forget gate
        g_g = 2.0 * s[:, 2 * H:3 * H] - 1.0   # cell candidate (= tanh)
        o_g = s[:, 3 * H:4 * H]               # output gate
        # TODO(synk): if the bundle dump shows the 32-lane gate slices adding
        # XLU rotate latency to the chain, split w_hh into four (H,H) column
        # blocks (lane-aligned dots) and re-measure.

        c = f_g * c + i_g * g_g
        h = o_g * jnp.tanh(c)

    # --- Heads: dropout is identity at inference; both outputs lane-dense. ---
    if Hpad > H:
        h_pad = jnp.concatenate(
            [h, jnp.zeros((Bp, Hpad - H), jnp.float32)], axis=-1)
    else:
        h_pad = h
    hid_ref[...] = h_pad.astype(hid_ref.dtype)
    out_ref[...] = (jnp.dot(h.astype(w_out_ref.dtype), w_out_ref[...],
                            preferred_element_type=jnp.float32)
                    + b_out_ref[...]).astype(out_ref.dtype)


def lstm_classifier_forward(x, w_ih, w_hh, w_out, b_out, *,
                            matmul_dtype=jnp.bfloat16):
    """x: (B, T, I) float32.  Weights pre-transposed as documented above.

    matmul_dtype controls only the hoisted input projection and the classifier
    head operands; the recurrent matmul, accumulation, state and all
    elementwise math stay in float32.
    """
    B, T, I = x.shape
    H = w_hh.shape[0]
    O = w_out.shape[1]
    assert w_ih.shape == (I, 4 * H) and w_hh.shape == (H, 4 * H)
    # Gate blocks must tile the 128-lane vreg for the single-sigmoid layout.
    assert (4 * H) % _LANES == 0, "4*hidden_size must be a multiple of 128"

    Bp = max(_SUBLANES, -(-B // _SUBLANES) * _SUBLANES)
    Opad = max(_LANES, -(-O // _LANES) * _LANES)
    Hpad = max(_LANES, -(-H // _LANES) * _LANES)

    # Time-major rows, batch zero-padded to Bp: row t*Bp + b <-> x[b, t, :].
    xt = jnp.transpose(x, (1, 0, 2))                               # (T, B, I)
    x_p = jnp.zeros((T, Bp, I), jnp.float32).at[:, :B, :].set(xt)
    x2d = x_p.reshape(T * Bp, I).astype(matmul_dtype)

    # Fold the tanh(x) = 2*sigmoid(2x) - 1 rescale into the g-gate columns so
    # the kernel needs only one transcendental pass per timestep.  (x2 is exact
    # in bf16/f32, so this does not change precision.)
    w_ih_s = w_ih.at[:, 2 * H:3 * H].multiply(2.0)
    w_hh_s = w_hh.at[:, 2 * H:3 * H].multiply(2.0)
    w_ih_m = w_ih_s.astype(matmul_dtype)            # big hoisted matmul
    w_hh_f = w_hh_s.astype(jnp.float32)             # recurrent matmul: f32
    w_out_p = jnp.zeros((H, Opad), matmul_dtype).at[:, :O].set(
        w_out.astype(matmul_dtype))
    b_out_p = jnp.zeros((1, Opad), jnp.float32).at[:, :O].set(
        b_out.astype(jnp.float32))

    out_p, hid_p = pl.pallas_call(
        _lstm_classifier_kernel,
        out_shape=(
            jax.ShapeDtypeStruct((Bp, Opad), jnp.float32),   # padded linear out
            jax.ShapeDtypeStruct((Bp, Hpad), jnp.float32),   # padded hidden
        ),
        grid_spec=pltpu.PrefetchScalarGridSpec(
            num_scalar_prefetch=0,
            grid=(1,),  # whole problem VMEM-resident; recurrence is in-kernel
            in_specs=[
                pl.BlockSpec((T * Bp, I), lambda i: (0, 0)),     # x (time-major)
                pl.BlockSpec((I, 4 * H), lambda i: (0, 0)),      # w_ih (scaled)
                pl.BlockSpec((H, 4 * H), lambda i: (0, 0)),      # w_hh (f32)
                pl.BlockSpec((H, Opad), lambda i: (0, 0)),       # linear weight
                pl.BlockSpec((1, Opad), lambda i: (0, 0)),       # linear bias
            ],
            out_specs=(
                pl.BlockSpec((Bp, Opad), lambda i: (0, 0)),
                pl.BlockSpec((Bp, Hpad), lambda i: (0, 0)),
            ),
        ),
        compiler_params=pltpu.CompilerParams(
            dimension_semantics=("arbitrary",)),
    )(x2d, w_ih_m, w_hh_f, w_out_p, b_out_p)

    out = out_p[:B, :O]
    hidden = hid_p[:B, :H][None, :, :]
    return out, hidden


def _reference_forward(x, w_ih, w_hh, w_out, b_out):
    """Pure-JAX f32 reference of the same forward (PyTorch-faithful)."""
    B, T, I = x.shape
    H = w_hh.shape[0]
    h = jnp.zeros((B, H), jnp.float32)
    c = jnp.zeros((B, H), jnp.float32)
    for t in range(T):
        gates = x[:, t, :] @ w_ih + h @ w_hh
        i_g = jax.nn.sigmoid(gates[:, 0 * H:1 * H])
        f_g = jax.nn.sigmoid(gates[:, 1 * H:2 * H])
        g_g = jnp.tanh(gates[:, 2 * H:3 * H])
        o_g = jax.nn.sigmoid(gates[:, 3 * H:4 * H])
        c = f_g * c + i_g * g_g
        h = o_g * jnp.tanh(c)
    out = h @ w_out + b_out
    return out, h[None]


if __name__ == "__main__":
    # Small shapes consistent with the module: batch=2, seq=8, input=16,
    # hidden=32 (so 4H = 128 lanes), output=8.
    B, T, I, H, O = 2, 8, 16, 32, 8

    key = jax.random.PRNGKey(0)
    k_x, k_ih, k_hh, k_w, k_b = jax.random.split(key, 5)

    x = jax.random.normal(k_x, (B, T, I), jnp.float32)
    scale = 1.0 / jnp.sqrt(jnp.float32(H))
    w_ih = jax.random.uniform(k_ih, (I, 4 * H), jnp.float32, -scale, scale)
    w_hh = jax.random.uniform(k_hh, (H, 4 * H), jnp.float32, -scale, scale)
    w_out = jax.random.uniform(k_w, (H, O), jnp.float32, -scale, scale)
    b_out = jax.random.uniform(k_b, (O,), jnp.float32, -scale, scale)

    out_ref, hidden_ref = _reference_forward(x, w_ih, w_hh, w_out, b_out)

    # Default path: bf16 operands for the hoisted projection + head, f32
    # recurrence / accumulation / state.
    out, hidden = lstm_classifier_forward(x, w_ih, w_hh, w_out, b_out)
    jax.block_until_ready((out, hidden))
    assert out.shape == (B, O) and hidden.shape == (1, B, H)
    assert jnp.allclose(out, out_ref, atol=2e-2, rtol=2e-2)
    assert jnp.allclose(hidden, hidden_ref, atol=2e-2, rtol=2e-2)

    # All-f32 matmul path: tight check that the algorithm matches the module
    # (tolerance-based since tanh is evaluated as 2*sigmoid(2x)-1).
    out32, hidden32 = lstm_classifier_forward(x, w_ih, w_hh, w_out, b_out,
                                              matmul_dtype=jnp.float32)
    jax.block_until_ready((out32, hidden32))
    assert jnp.allclose(out32, out_ref, atol=1e-4, rtol=1e-4)
    assert jnp.allclose(hidden32, hidden_ref, atol=1e-4, rtol=1e-4)

    print("KERNEL_OK")
</pallas_src>

<mosaic_0001>
module attributes {stable_mosaic.version = 11 : i64} {
  func.func @_lstm_classifier_kernel(%arg0: i32, %arg1: memref<64x16xbf16, #tpu.memory_space<vmem>>, %arg2: memref<16x128xbf16, #tpu.memory_space<vmem>>, %arg3: memref<32x128xf32, #tpu.memory_space<vmem>>, %arg4: memref<32x128xbf16, #tpu.memory_space<vmem>>, %arg5: memref<1x128xf32, #tpu.memory_space<vmem>>, %arg6: memref<8x128xf32, #tpu.memory_space<vmem>>, %arg7: memref<8x128xf32, #tpu.memory_space<vmem>>) attributes {dimension_semantics = [#tpu.dimension_semantics<arbitrary>], iteration_bounds = array<i64: 1>, scalar_prefetch = 0 : i64, scratch_operands = 0 : i64, tpu.core_type = #tpu.core_type<tc>, window_params = [{pipeline_mode = #tpu.pipeline_mode<synchronous>, transform_indices = @transform_0, window_bounds = array<i64: 64, 16>}, {pipeline_mode = #tpu.pipeline_mode<synchronous>, transform_indices = @transform_1, window_bounds = array<i64: 16, 128>}, {pipeline_mode = #tpu.pipeline_mode<synchronous>, transform_indices = @transform_2, window_bounds = array<i64: 32, 128>}, {pipeline_mode = #tpu.pipeline_mode<synchronous>, transform_indices = @transform_3, window_bounds = array<i64: 32, 128>}, {pipeline_mode = #tpu.pipeline_mode<synchronous>, transform_indices = @transform_4, window_bounds = array<i64: 1, 128>}, {pipeline_mode = #tpu.pipeline_mode<synchronous>, transform_indices = @transform_5, window_bounds = array<i64: 8, 128>}, {pipeline_mode = #tpu.pipeline_mode<synchronous>, transform_indices = @transform_6, window_bounds = array<i64: 8, 128>}]} {
    %c0 = arith.constant 0 : index
    %c0_0 = arith.constant 0 : index
    %0 = vector.load %arg1[%c0, %c0_0] : memref<64x16xbf16, #tpu.memory_space<vmem>>, vector<64x16xbf16>
    %c0_1 = arith.constant 0 : index
    %c0_2 = arith.constant 0 : index
    %1 = vector.load %arg2[%c0_1, %c0_2] : memref<16x128xbf16, #tpu.memory_space<vmem>>, vector<16x128xbf16>
    %cst = arith.constant dense<0.000000e+00> : vector<64x128xf32>
    %2 = tpu.matmul %0, %1, %cst {dimension_numbers = #tpu.dot_dimension_numbers<[1], [0], [0], [1], [0, 0, 1, 1], [], []>} : vector<64x16xbf16>, vector<16x128xbf16>, vector<64x128xf32> -> vector<64x128xf32>
    %c0_3 = arith.constant 0 : index
    %c0_4 = arith.constant 0 : index
    %3 = vector.load %arg3[%c0_3, %c0_4] : memref<32x128xf32, #tpu.memory_space<vmem>>, vector<32x128xf32>
    %cst_5 = arith.constant 0.000000e+00 : f32
    %4 = vector.broadcast %cst_5 : f32 to vector<8x32xf32>
    %cst_6 = arith.constant 0.000000e+00 : f32
    %5 = vector.broadcast %cst_6 : f32 to vector<8x32xf32>
    %6 = vector.extract_strided_slice %2 {offsets = [0, 0], sizes = [8, 128], strides = [1, 1]} : vector<64x128xf32> to vector<8x128xf32>
    %cst_7 = arith.constant dense<0.000000e+00> : vector<8x128xf32>
    %7 = tpu.matmul %4, %3, %cst_7 {dimension_numbers = #tpu.dot_dimension_numbers<[1], [0], [0], [1], [0, 0, 1, 1], [], []>} : vector<8x32xf32>, vector<32x128xf32>, vector<8x128xf32> -> vector<8x128xf32>
    %8 = arith.addf %6, %7 : vector<8x128xf32>
    %9 = arith.negf %8 : vector<8x128xf32>
    %10 = math.exp %9 : vector<8x128xf32>
    %cst_8 = arith.constant 1.000000e+00 : f32
    %11 = vector.broadcast %cst_8 : f32 to vector<8x128xf32>
    %12 = arith.addf %11, %10 : vector<8x128xf32>
    %13 = arith.divf %11, %12 : vector<8x128xf32>
    %14 = vector.extract_strided_slice %13 {offsets = [0, 0], sizes = [8, 32], strides = [1, 1]} : vector<8x128xf32> to vector<8x32xf32>
    %15 = vector.extract_strided_slice %13 {offsets = [0, 32], sizes = [8, 32], strides = [1, 1]} : vector<8x128xf32> to vector<8x32xf32>
    %16 = vector.extract_strided_slice %13 {offsets = [0, 64], sizes = [8, 32], strides = [1, 1]} : vector<8x128xf32> to vector<8x32xf32>
    %cst_9 = arith.constant 2.000000e+00 : f32
    %17 = vector.broadcast %cst_9 : f32 to vector<8x32xf32>
    %18 = arith.mulf %17, %16 : vector<8x32xf32>
    %cst_10 = arith.constant 1.000000e+00 : f32
    %19 = vector.broadcast %cst_10 : f32 to vector<8x32xf32>
    %20 = arith.subf %18, %19 : vector<8x32xf32>
    %21 = vector.extract_strided_slice %13 {offsets = [0, 96], sizes = [8, 32], strides = [1, 1]} : vector<8x128xf32> to vector<8x32xf32>
    %22 = arith.mulf %15, %5 : vector<8x32xf32>
    %23 = arith.mulf %14, %20 : vector<8x32xf32>
    %24 = arith.addf %22, %23 : vector<8x32xf32>
    %25 = math.tanh %24 : vector<8x32xf32>
    %26 = arith.mulf %21, %25 : vector<8x32xf32>
    %27 = vector.extract_strided_slice %2 {offsets = [8, 0], sizes = [8, 128], strides = [1, 1]} : vector<64x128xf32> to vector<8x128xf32>
    %cst_11 = arith.constant dense<0.000000e+00> : vector<8x128xf32>
    %28 = tpu.matmul %26, %3, %cst_11 {dimension_numbers = #tpu.dot_dimension_numbers<[1], [0], [0], [1], [0, 0, 1, 1], [], []>} : vector<8x32xf32>, vector<32x128xf32>, vector<8x128xf32> -> vector<8x128xf32>
    %29 = arith.addf %27, %28 : vector<8x128xf32>
    %30 = arith.negf %29 : vector<8x128xf32>
    %31 = math.exp %30 : vector<8x128xf32>
    %cst_12 = arith.constant 1.000000e+00 : f32
    %32 = vector.broadcast %cst_12 : f32 to vector<8x128xf32>
    %33 = arith.addf %32, %31 : vector<8x128xf32>
    %34 = arith.divf %32, %33 : vector<8x128xf32>
    %35 = vector.extract_strided_slice %34 {offsets = [0, 0], sizes = [8, 32], strides = [1, 1]} : vector<8x128xf32> to vector<8x32xf32>
    %36 = vector.extract_strided_slice %34 {offsets = [0, 32], sizes = [8, 32], strides = [1, 1]} : vector<8x128xf32> to vector<8x32xf32>
    %37 = vector.extract_strided_slice %34 {offsets = [0, 64], sizes = [8, 32], strides = [1, 1]} : vector<8x128xf32> to vector<8x32xf32>
    %cst_13 = arith.constant 2.000000e+00 : f32
    %38 = vector.broadcast %cst_13 : f32 to vector<8x32xf32>
    %39 = arith.mulf %38, %37 : vector<8x32xf32>
    %cst_14 = arith.constant 1.000000e+00 : f32
    %40 = vector.broadcast %cst_14 : f32 to vector<8x32xf32>
    %41 = arith.subf %39, %40 : vector<8x32xf32>
    %42 = vector.extract_strided_slice %34 {offsets = [0, 96], sizes = [8, 32], strides = [1, 1]} : vector<8x128xf32> to vector<8x32xf32>
    %43 = arith.mulf %36, %24 : vector<8x32xf32>
    %44 = arith.mulf %35, %41 : vector<8x32xf32>
    %45 = arith.addf %43, %44 : vector<8x32xf32>
    %46 = math.tanh %45 : vector<8x32xf32>
    %47 = arith.mulf %42, %46 : vector<8x32xf32>
    %48 = vector.extract_strided_slice %2 {offsets = [16, 0], sizes = [8, 128], strides = [1, 1]} : vector<64x128xf32> to vector<8x128xf32>
    %cst_15 = arith.constant dense<0.000000e+00> : vector<8x128xf32>
    %49 = tpu.matmul %47, %3, %cst_15 {dimension_numbers = #tpu.dot_dimension_numbers<[1], [0], [0], [1], [0, 0, 1, 1], [], []>} : vector<8x32xf32>, vector<32x128xf32>, vector<8x128xf32> -> vector<8x128xf32>
    %50 = arith.addf %48, %49 : vector<8x128xf32>
    %51 = arith.negf %50 : vector<8x128xf32>
    %52 = math.exp %51 : vector<8x128xf32>
    %cst_16 = arith.constant 1.000000e+00 : f32
    %53 = vector.broadcast %cst_16 : f32 to vector<8x128xf32>
    %54 = arith.addf %53, %52 : vector<8x128xf32>
    %55 = arith.divf %53, %54 : vector<8x128xf32>
    %56 = vector.extract_strided_slice %55 {offsets = [0, 0], sizes = [8, 32], strides = [1, 1]} : vector<8x128xf32> to vector<8x32xf32>
    %57 = vector.extract_strided_slice %55 {offsets = [0, 32], sizes = [8, 32], strides = [1, 1]} : vector<8x128xf32> to vector<8x32xf32>
    %58 = vector.extract_strided_slice %55 {offsets = [0, 64], sizes = [8, 32], strides = [1, 1]} : vector<8x128xf32> to vector<8x32xf32>
    %cst_17 = arith.constant 2.000000e+00 : f32
    %59 = vector.broadcast %cst_17 : f32 to vector<8x32xf32>
    %60 = arith.mulf %59, %58 : vector<8x32xf32>
    %cst_18 = arith.constant 1.000000e+00 : f32
    %61 = vector.broadcast %cst_18 : f32 to vector<8x32xf32>
    %62 = arith.subf %60, %61 : vector<8x32xf32>
    %63 = vector.extract_strided_slice %55 {offsets = [0, 96], sizes = [8, 32], strides = [1, 1]} : vector<8x128xf32> to vector<8x32xf32>
    %64 = arith.mulf %57, %45 : vector<8x32xf32>
    %65 = arith.mulf %56, %62 : vector<8x32xf32>
    %66 = arith.addf %64, %65 : vector<8x32xf32>
    %67 = math.tanh %66 : vector<8x32xf32>
    %68 = arith.mulf %63, %67 : vector<8x32xf32>
    %69 = vector.extract_strided_slice %2 {offsets = [24, 0], sizes = [8, 128], strides = [1, 1]} : vector<64x128xf32> to vector<8x128xf32>
    %cst_19 = arith.constant dense<0.000000e+00> : vector<8x128xf32>
    %70 = tpu.matmul %68, %3, %cst_19 {dimension_numbers = #tpu.dot_dimension_numbers<[1], [0], [0], [1], [0, 0, 1, 1], [], []>} : vector<8x32xf32>, vector<32x128xf32>, vector<8x128xf32> -> vector<8x128xf32>
    %71 = arith.addf %69, %70 : vector<8x128xf32>
    %72 = arith.negf %71 : vector<8x128xf32>
    %73 = math.exp %72 : vector<8x128xf32>
    %cst_20 = arith.constant 1.000000e+00 : f32
    %74 = vector.broadcast %cst_20 : f32 to vector<8x128xf32>
    %75 = arith.addf %74, %73 : vector<8x128xf32>
    %76 = arith.divf %74, %75 : vector<8x128xf32>
    %77 = vector.extract_strided_slice %76 {offsets = [0, 0], sizes = [8, 32], strides = [1, 1]} : vector<8x128xf32> to vector<8x32xf32>
    %78 = vector.extract_strided_slice %76 {offsets = [0, 32], sizes = [8, 32], strides = [1, 1]} : vector<8x128xf32> to vector<8x32xf32>
    %79 = vector.extract_strided_slice %76 {offsets = [0, 64], sizes = [8, 32], strides = [1, 1]} : vector<8x128xf32> to vector<8x32xf32>
    %cst_21 = arith.constant 2.000000e+00 : f32
    %80 = vector.broadcast %cst_21 : f32 to vector<8x32xf32>
    %81 = arith.mulf %80, %79 : vector<8x32xf32>
    %cst_22 = arith.constant 1.000000e+00 : f32
    %82 = vector.broadcast %cst_22 : f32 to vector<8x32xf32>
    %83 = arith.subf %81, %82 : vector<8x32xf32>
    %84 = vector.extract_strided_slice %76 {offsets = [0, 96], sizes = [8, 32], strides = [1, 1]} : vector<8x128xf32> to vector<8x32xf32>
    %85 = arith.mulf %78, %66 : vector<8x32xf32>
    %86 = arith.mulf %77, %83 : vector<8x32xf32>
    %87 = arith.addf %85, %86 : vector<8x32xf32>
    %88 = math.tanh %87 : vector<8x32xf32>
    %89 = arith.mulf %84, %88 : vector<8x32xf32>
    %90 = vector.extract_strided_slice %2 {offsets = [32, 0], sizes = [8, 128], strides = [1, 1]} : vector<64x128xf32> to vector<8x128xf32>
    %cst_23 = arith.constant dense<0.000000e+00> : vector<8x128xf32>
    %91 = tpu.matmul %89, %3, %cst_23 {dimension_numbers = #tpu.dot_dimension_numbers<[1], [0], [0], [1], [0, 0, 1, 1], [], []>} : vector<8x32xf32>, vector<32x128xf32>, vector<8x128xf32> -> vector<8x128xf32>
    %92 = arith.addf %90, %91 : vector<8x128xf32>
    %93 = arith.negf %92 : vector<8x128xf32>
    %94 = math.exp %93 : vector<8x128xf32>
    %cst_24 = arith.constant 1.000000e+00 : f32
    %95 = vector.broadcast %cst_24 : f32 to vector<8x128xf32>
    %96 = arith.addf %95, %94 : vector<8x128xf32>
    %97 = arith.divf %95, %96 : vector<8x128xf32>
    %98 = vector.extract_strided_slice %97 {offsets = [0, 0], sizes = [8, 32], strides = [1, 1]} : vector<8x128xf32> to vector<8x32xf32>
    %99 = vector.extract_strided_slice %97 {offsets = [0, 32], sizes = [8, 32], strides = [1, 1]} : vector<8x128xf32> to vector<8x32xf32>
    %100 = vector.extract_strided_slice %97 {offsets = [0, 64], sizes = [8, 32], strides = [1, 1]} : vector<8x128xf32> to vector<8x32xf32>
    %cst_25 = arith.constant 2.000000e+00 : f32
    %101 = vector.broadcast %cst_25 : f32 to vector<8x32xf32>
    %102 = arith.mulf %101, %100 : vector<8x32xf32>
    %cst_26 = arith.constant 1.000000e+00 : f32
    %103 = vector.broadcast %cst_26 : f32 to vector<8x32xf32>
    %104 = arith.subf %102, %103 : vector<8x32xf32>
    %105 = vector.extract_strided_slice %97 {offsets = [0, 96], sizes = [8, 32], strides = [1, 1]} : vector<8x128xf32> to vector<8x32xf32>
    %106 = arith.mulf %99, %87 : vector<8x32xf32>
    %107 = arith.mulf %98, %104 : vector<8x32xf32>
    %108 = arith.addf %106, %107 : vector<8x32xf32>
    %109 = math.tanh %108 : vector<8x32xf32>
    %110 = arith.mulf %105, %109 : vector<8x32xf32>
    %111 = vector.extract_strided_slice %2 {offsets = [40, 0], sizes = [8, 128], strides = [1, 1]} : vector<64x128xf32> to vector<8x128xf32>
    %cst_27 = arith.constant dense<0.000000e+00> : vector<8x128xf32>
    %112 = tpu.matmul %110, %3, %cst_27 {dimension_numbers = #tpu.dot_dimension_numbers<[1], [0], [0], [1], [0, 0, 1, 1], [], []>} : vector<8x32xf32>, vector<32x128xf32>, vector<8x128xf32> -> vector<8x128xf32>
    %113 = arith.addf %111, %112 : vector<8x128xf32>
    %114 = arith.negf %113 : vector<8x128xf32>
    %115 = math.exp %114 : vector<8x128xf32>
    %cst_28 = arith.constant 1.000000e+00 : f32
    %116 = vector.broadcast %cst_28 : f32 to vector<8x128xf32>
    %117 = arith.addf %116, %115 : vector<8x128xf32>
    %118 = arith.divf %116, %117 : vector<8x128xf32>
    %119 = vector.extract_strided_slice %118 {offsets = [0, 0], sizes = [8, 32], strides = [1, 1]} : vector<8x128xf32> to vector<8x32xf32>
    %120 = vector.extract_strided_slice %118 {offsets = [0, 32], sizes = [8, 32], strides = [1, 1]} : vector<8x128xf32> to vector<8x32xf32>
    %121 = vector.extract_strided_slice %118 {offsets = [0, 64], sizes = [8, 32], strides = [1, 1]} : vector<8x128xf32> to vector<8x32xf32>
    %cst_29 = arith.constant 2.000000e+00 : f32
    %122 = vector.broadcast %cst_29 : f32 to vector<8x32xf32>
    %123 = arith.mulf %122, %121 : vector<8x32xf32>
    %cst_30 = arith.constant 1.000000e+00 : f32
    %124 = vector.broadcast %cst_30 : f32 to vector<8x32xf32>
    %125 = arith.subf %123, %124 : vector<8x32xf32>
    %126 = vector.extract_strided_slice %118 {offsets = [0, 96], sizes = [8, 32], strides = [1, 1]} : vector<8x128xf32> to vector<8x32xf32>
    %127 = arith.mulf %120, %108 : vector<8x32xf32>
    %128 = arith.mulf %119, %125 : vector<8x32xf32>
    %129 = arith.addf %127, %128 : vector<8x32xf32>
    %130 = math.tanh %129 : vector<8x32xf32>
    %131 = arith.mulf %126, %130 : vector<8x32xf32>
    %132 = vector.extract_strided_slice %2 {offsets = [48, 0], sizes = [8, 128], strides = [1, 1]} : vector<64x128xf32> to vector<8x128xf32>
    %cst_31 = arith.constant dense<0.000000e+00> : vector<8x128xf32>
    %133 = tpu.matmul %131, %3, %cst_31 {dimension_numbers = #tpu.dot_dimension_numbers<[1], [0], [0], [1], [0, 0, 1, 1], [], []>} : vector<8x32xf32>, vector<32x128xf32>, vector<8x128xf32> -> vector<8x128xf32>
    %134 = arith.addf %132, %133 : vector<8x128xf32>
    %135 = arith.negf %134 : vector<8x128xf32>
    %136 = math.exp %135 : vector<8x128xf32>
    %cst_32 = arith.constant 1.000000e+00 : f32
    %137 = vector.broadcast %cst_32 : f32 to vector<8x128xf32>
    %138 = arith.addf %137, %136 : vector<8x128xf32>
    %139 = arith.divf %137, %138 : vector<8x128xf32>
    %140 = vector.extract_strided_slice %139 {offsets = [0, 0], sizes = [8, 32], strides = [1, 1]} : vector<8x128xf32> to vector<8x32xf32>
    %141 = vector.extract_strided_slice %139 {offsets = [0, 32], sizes = [8, 32], strides = [1, 1]} : vector<8x128xf32> to vector<8x32xf32>
    %142 = vector.extract_strided_slice %139 {offsets = [0, 64], sizes = [8, 32], strides = [1, 1]} : vector<8x128xf32> to vector<8x32xf32>
    %cst_33 = arith.constant 2.000000e+00 : f32
    %143 = vector.broadcast %cst_33 : f32 to vector<8x32xf32>
    %144 = arith.mulf %143, %142 : vector<8x32xf32>
    %cst_34 = arith.constant 1.000000e+00 : f32
    %145 = vector.broadcast %cst_34 : f32 to vector<8x32xf32>
    %146 = arith.subf %144, %145 : vector<8x32xf32>
    %147 = vector.extract_strided_slice %139 {offsets = [0, 96], sizes = [8, 32], strides = [1, 1]} : vector<8x128xf32> to vector<8x32xf32>
    %148 = arith.mulf %141, %129 : vector<8x32xf32>
    %149 = arith.mulf %140, %146 : vector<8x32xf32>
    %150 = arith.addf %148, %149 : vector<8x32xf32>
    %151 = math.tanh %150 : vector<8x32xf32>
    %152 = arith.mulf %147, %151 : vector<8x32xf32>
    %153 = vector.extract_strided_slice %2 {offsets = [56, 0], sizes = [8, 128], strides = [1, 1]} : vector<64x128xf32> to vector<8x128xf32>
    %cst_35 = arith.constant dense<0.000000e+00> : vector<8x128xf32>
    %154 = tpu.matmul %152, %3, %cst_35 {dimension_numbers = #tpu.dot_dimension_numbers<[1], [0], [0], [1], [0, 0, 1, 1], [], []>} : vector<8x32xf32>, vector<32x128xf32>, vector<8x128xf32> -> vector<8x128xf32>
    %155 = arith.addf %153, %154 : vector<8x128xf32>
    %156 = arith.negf %155 : vector<8x128xf32>
    %157 = math.exp %156 : vector<8x128xf32>
    %cst_36 = arith.constant 1.000000e+00 : f32
    %158 = vector.broadcast %cst_36 : f32 to vector<8x128xf32>
    %159 = arith.addf %158, %157 : vector<8x128xf32>
    %160 = arith.divf %158, %159 : vector<8x128xf32>
    %161 = vector.extract_strided_slice %160 {offsets = [0, 0], sizes = [8, 32], strides = [1, 1]} : vector<8x128xf32> to vector<8x32xf32>
    %162 = vector.extract_strided_slice %160 {offsets = [0, 32], sizes = [8, 32], strides = [1, 1]} : vector<8x128xf32> to vector<8x32xf32>
    %163 = vector.extract_strided_slice %160 {offsets = [0, 64], sizes = [8, 32], strides = [1, 1]} : vector<8x128xf32> to vector<8x32xf32>
    %cst_37 = arith.constant 2.000000e+00 : f32
    %164 = vector.broadcast %cst_37 : f32 to vector<8x32xf32>
    %165 = arith.mulf %164, %163 : vector<8x32xf32>
    %cst_38 = arith.constant 1.000000e+00 : f32
    %166 = vector.broadcast %cst_38 : f32 to vector<8x32xf32>
    %167 = arith.subf %165, %166 : vector<8x32xf32>
    %168 = vector.extract_strided_slice %160 {offsets = [0, 96], sizes = [8, 32], strides = [1, 1]} : vector<8x128xf32> to vector<8x32xf32>
    %169 = arith.mulf %162, %150 : vector<8x32xf32>
    %170 = arith.mulf %161, %167 : vector<8x32xf32>
    %171 = arith.addf %169, %170 : vector<8x32xf32>
    %172 = math.tanh %171 : vector<8x32xf32>
    %173 = arith.mulf %168, %172 : vector<8x32xf32>
    %cst_39 = arith.constant 0.000000e+00 : f32
    %174 = vector.broadcast %cst_39 : f32 to vector<8x96xf32>
    %175 = tpu.concatenate %173, %174 in 1 : vector<8x32xf32>, vector<8x96xf32> -> vector<8x128xf32>
    %c0_40 = arith.constant 0 : index
    %c0_41 = arith.constant 0 : index
    %176 = vector.load %arg7[%c0_40, %c0_41] : memref<8x128xf32, #tpu.memory_space<vmem>>, vector<8x128xf32>
    tpu.vector_store %arg7[%c0_40, %c0_41], %175 {strides = array<i32>} : memref<8x128xf32, #tpu.memory_space<vmem>>, vector<8x128xf32>,
    %177 = arith.truncf %173 : vector<8x32xf32> to vector<8x32xbf16>
    %c0_42 = arith.constant 0 : index
    %c0_43 = arith.constant 0 : index
    %178 = vector.load %arg4[%c0_42, %c0_43] : memref<32x128xbf16, #tpu.memory_space<vmem>>, vector<32x128xbf16>
    %cst_44 = arith.constant dense<0.000000e+00> : vector<8x128xf32>
    %179 = tpu.matmul %177, %178, %cst_44 {dimension_numbers = #tpu.dot_dimension_numbers<[1], [0], [0], [1], [0, 0, 1, 1], [], []>} : vector<8x32xbf16>, vector<32x128xbf16>, vector<8x128xf32> -> vector<8x128xf32>
    %c0_45 = arith.constant 0 : index
    %c0_46 = arith.constant 0 : index
    %180 = vector.load %arg5[%c0_45, %c0_46] : memref<1x128xf32, #tpu.memory_space<vmem>>, vector<1x128xf32>
    %181 = vector.broadcast %180 : vector<1x128xf32> to vector<8x128xf32>
    %182 = arith.addf %179, %181 : vector<8x128xf32>
    %c0_47 = arith.constant 0 : index
    %c0_48 = arith.constant 0 : index
    %183 = vector.load %arg6[%c0_47, %c0_48] : memref<8x128xf32, #tpu.memory_space<vmem>>, vector<8x128xf32>
    tpu.vector_store %arg6[%c0_47, %c0_48], %182 {strides = array<i32>} : memref<8x128xf32, #tpu.memory_space<vmem>>, vector<8x128xf32>,
    return
  }
  func.func @transform_0(%arg0: i32) -> (i32, i32) {
    %c0_i32 = arith.constant 0 : i32
    %c0_i32_0 = arith.constant 0 : i32
    %c0_i32_1 = arith.constant 0 : i32
    return %c0_i32, %c0_i32_0 : i32, i32
  }
  func.func @transform_1(%arg0: i32) -> (i32, i32) {
    %c0_i32 = arith.constant 0 : i32
    %c0_i32_0 = arith.constant 0 : i32
    %c0_i32_1 = arith.constant 0 : i32
    return %c0_i32, %c0_i32_0 : i32, i32
  }
  func.func @transform_2(%arg0: i32) -> (i32, i32) {
    %c0_i32 = arith.constant 0 : i32
    %c0_i32_0 = arith.constant 0 : i32
    %c0_i32_1 = arith.constant 0 : i32
    return %c0_i32, %c0_i32_0 : i32, i32
  }
  func.func @transform_3(%arg0: i32) -> (i32, i32) {
    %c0_i32 = arith.constant 0 : i32
    %c0_i32_0 = arith.constant 0 : i32
    %c0_i32_1 = arith.constant 0 : i32
    return %c0_i32, %c0_i32_0 : i32, i32
  }
  func.func @transform_4(%arg0: i32) -> (i32, i32) {
    %c0_i32 = arith.constant 0 : i32
    %c0_i32_0 = arith.constant 0 : i32
    %c0_i32_1 = arith.constant 0 : i32
    return %c0_i32, %c0_i32_0 : i32, i32
  }
  func.func @transform_5(%arg0: i32) -> (i32, i32) {
    %c0_i32 = arith.constant 0 : i32
    %c0_i32_0 = arith.constant 0 : i32
    %c0_i32_1 = arith.constant 0 : i32
    return %c0_i32, %c0_i32_0 : i32, i32
  }
  func.func @transform_6(%arg0: i32) -> (i32, i32) {
    %c0_i32 = arith.constant 0 : i32
    %c0_i32_0 = arith.constant 0 : i32
    %c0_i32_1 = arith.constant 0 : i32
    return %c0_i32, %c0_i32_0 : i32, i32
  }
}

</mosaic_0001>

<llo_original>
// kernel: tpu_custom_call.1
$region0: #{tpu_custom_call.1}
  #allocation0 [shape = 'u32[]', space=smem, size = 0x4, offset = 0x4, fixed_abs, tag = 'smem constant byte address 0x4 - core index']
  #allocation1 [shape = 'u32[72,128]{1,0:T(1,128)}', space=vmem, size = 0x9000, scoped, tag = 'internal scratch']
  %s0 = inlined_call_operand.vmem [shape: bf16[64,16], index: 0, kind: input, shape index: {}]
  %s1 = inlined_call_operand.vmem [shape: bf16[16,128], index: 1, kind: input, shape index: {}]
  %s2 = inlined_call_operand.vmem [shape: f32[32,128], index: 2, kind: input, shape index: {}]
  %s3 = inlined_call_operand.hbm [shape: bf16[32,128], index: 3, kind: input, shape index: {}]
  %s4 = inlined_call_operand.vmem [shape: f32[1,128], index: 4, kind: input, shape index: {}]
  %s5 = inlined_call_operand.hbm [shape: f32[8,128], index: 5, kind: output, shape index: {0}]
  %s6 = inlined_call_operand.hbm [shape: f32[8,128], index: 6, kind: output, shape index: {1}]
  %7 = xla_tuple %s5, %s6
  %s8 = sld [smem:[#allocation0]]
  $region42: #{tpu_custom_call.1} parent=0
    _
  %s10 = ssub.s32 1, %s8
  %s11 = scalar_select 0, %s10, %s8
  $region1: #{tpu_custom_call.1} parent=0
    #allocation2 [shape = 'u8[8192]{0}', space=vmem, size = 0x2000, scoped, tag = 'input window, operand 3, single buffered']
    #allocation3 [shape = 's32[1]{0}', space=sflag, size = 0x4, scoped, tag = 'scoped memory for tpu_custom_call.1']
    #allocation4 [shape = 's32[1]{0}', space=sflag, size = 0x4, scoped, tag = 'scoped memory for tpu_custom_call.1']
    #allocation5 [shape = 'u8[4096]{0}', space=vmem, size = 0x1000, scoped, tag = 'output window, operand 0, single buffered']
    #allocation6 [shape = 'u8[4096]{0}', space=vmem, size = 0x1000, scoped, tag = 'output window, operand 1, single buffered']
    #allocation7 [shape = 's32[1]{0}', space=sflag, size = 0x4, scoped, tag = 'scoped memory for tpu_custom_call.1']
    %12 = vsyncpa [#allocation3], 0
    %13 = vsyncpa [#allocation4], 0
    %14 = vsyncpa [#allocation7], 0
    // Predicated region
    $region2: #{tpu_custom_call.1} parent=1 // pred_check
      _
    $region3: #{tpu_custom_call.1} parent=1 // pred_check_branch
      %16 = sbr.rel (0) target = $region5
    $region4: #{tpu_custom_call.1} parent=1 // pred_region
      _
    $region5: #{tpu_custom_call.1} parent=1 // pred_fallthru
      _
    // Predicated region
    $region6: #{tpu_custom_call.1} parent=1 // pred_check
      _
    $region7: #{tpu_custom_call.1} parent=1 // pred_check_branch
      %18 = sbr.rel (0) target = $region9
    $region8: #{tpu_custom_call.1} parent=1 // pred_region
      _
    $region9: #{tpu_custom_call.1} parent=1 // pred_fallthru
      _
    // Predicated region
    $region10: #{tpu_custom_call.1} parent=1 // pred_check
      _
    $region11: #{tpu_custom_call.1} parent=1 // pred_check_branch
      %20 = sbr.rel (0) target = $region13
    $region12: #{tpu_custom_call.1} parent=1 // pred_region
      _
    $region13: #{tpu_custom_call.1} parent=1 // pred_fallthru
      _
    // Predicated region
    $region14: #{tpu_custom_call.1} parent=1 // pred_check
      _
    $region15: #{tpu_custom_call.1} parent=1 // pred_check_branch
      %22 = sbr.rel (0) target = $region17
    $region16: #{tpu_custom_call.1} parent=1 // pred_region
      %24 = vsyncadd [#allocation3], 0
      %s25 = sshll.u32 %s3, 4
      %s26 = int_to_ptr.hbm [resolvable:$true] %s25
      %s27 = sshll.u32 [#allocation2], 4
      %s28 = int_to_ptr.vmem [resolvable:$true] %s27
      %33 = dma.hbm_to_vmem [thread:$0]  %s26, 256, %s28, [#allocation3], 64, 64, 4
    $region17: #{tpu_custom_call.1} parent=1 // pred_fallthru
      _
    // Predicated region
    $region18: #{tpu_custom_call.1} parent=1 // pred_check
      _
    $region19: #{tpu_custom_call.1} parent=1 // pred_check_branch
      %35 = sbr.rel (0) target = $region21
    $region20: #{tpu_custom_call.1} parent=1 // pred_region
      _
    $region21: #{tpu_custom_call.1} parent=1 // pred_fallthru
      _
    // Predicated region
    $region22: #{tpu_custom_call.1} parent=1 // pred_check
      _
    $region23: #{tpu_custom_call.1} parent=1 // pred_check_branch
      %37 = sbr.rel (0) target = $region25
    $region24: #{tpu_custom_call.1} parent=1 // pred_region
      %39 = dma.done [#allocation3], 256
    $region25: #{tpu_custom_call.1} parent=1 // pred_fallthru
      _
    %v41 = vld [vmem:[%s0] sm:$0xf]
    %v42 = vld [vmem:[%s0 + $0x4] sm:$0xf]
    %v43 = vld [vmem:[%s0 + $0x8] sm:$0xf]
    %v44 = vld [vmem:[%s0 + $0xc] sm:$0xf]
    %v45 = vld [vmem:[%s0 + $0x10] sm:$0xf]
    %v46 = vld [vmem:[%s0 + $0x14] sm:$0xf]
    %v47 = vld [vmem:[%s0 + $0x18] sm:$0xf]
    %v48 = vld [vmem:[%s0 + $0x1c] sm:$0xf]
    %v49 = vld [vmem:[%s1] sm:$0xf]
    %v50 = vld [vmem:[%s1 + $0x4] sm:$0xf]
    %v59 = vunpack.c.l.b16 %v41
    %v60 = vunpack.c.l.b16 %v42
    %v61 = vunpack.c.l.b16 %v43
    %v62 = vunpack.c.l.b16 %v44
    %v63 = vunpack.c.l.b16 %v45
    %v64 = vunpack.c.l.b16 %v46
    %v65 = vunpack.c.l.b16 %v47
    %v66 = vunpack.c.l.b16 %v48
    %v67 = vpack.c.b16 %v60, %v59
    %v68 = vpack.c.b16 %v62, %v61
    %v69 = vpack.c.b16 %v64, %v63
    %v70 = vpack.c.b16 %v66, %v65
    %v73 = vunpack.c.l.b16 %v49
    %v74 = vunpack.c.l.b16 %v50
    %v75 = vpack.c.b16 %v74, %v73
    %vm77 = vcmask 130048
    %v79 = vsel %vm77, %v67, 0
    %v82 = vsel %vm77, %v68, 0
    %v85 = vsel %vm77, %v69, 0
    %v88 = vsel %vm77, %v70, 0
    %90 = vmatpush.bf16.msra.mxu0 0
    %91 = vmatpush.bf16.msra.mxu0 0
    %92 = vmatpush.bf16.msra.mxu0 0
    %93 = vmatpush.bf16.msra.mxu0 0
    %94 = vmatpush.bf16.msra.mxu0 0
    %95 = vmatpush.bf16.msra.mxu0 0
    %96 = vmatpush.bf16.msra.mxu0 0
    %97 = vmatpush.bf16.msra.mxu0 %v75
    %98 = vmatmul.bf16.gmra.mxu0 %v79
    %v99 = vpop.f32.mrf.mxu0
    %v100 = vadd.f32 0.0, %v99
    %v101 = vpop.f32.mrf.mxu0
    %v102 = vadd.f32 0.0, %v101
    %103 = vmatmul.bf16.gmra.mxu0 %v82
    %v104 = vpop.f32.mrf.mxu0
    %v105 = vadd.f32 0.0, %v104
    %v106 = vpop.f32.mrf.mxu0
    %v107 = vadd.f32 0.0, %v106
    %108 = vmatmul.bf16.gmra.mxu0 %v85
    %v109 = vpop.f32.mrf.mxu0
    %v110 = vadd.f32 0.0, %v109
    %v111 = vpop.f32.mrf.mxu0
    %v112 = vadd.f32 0.0, %v111
    %113 = vmatmul.bf16.gmra.mxu0 %v88
    %v114 = vpop.f32.mrf.mxu0
    %v115 = vadd.f32 0.0, %v114
    %v116 = vpop.f32.mrf.mxu0
    %v117 = vadd.f32 0.0, %v116
    %118 = vdwg.mxu0
    %v119 = vld [vmem:[%s2] sm:$0xff]
    %v120 = vld [vmem:[%s2 + $0x8] sm:$0xff]
    %v121 = vld [vmem:[%s2 + $0x10] sm:$0xff]
    %v122 = vld [vmem:[%s2 + $0x18] sm:$0xff]
    %vm123 = vcmask 261120
    %v125 = vsel %vm123, 0.0, 0
    %127 = vmatpush.msra.mxu0 0.0
    %128 = vmatpush.msra.mxu0 0.0
    %129 = vmatpush.msra.mxu0 0.0
    %130 = vmatpush.msra.mxu0 0.0
    %131 = vmatpush.msra.mxu0 0.0
    %132 = vmatpush.msra.mxu0 0.0
    %133 = vmatpush.msra.mxu0 0.0
    %134 = vmatpush.msra.mxu0 0.0
    %135 = vmatpush.msra.mxu0 0.0
    %136 = vmatpush.msra.mxu0 0.0
    %137 = vmatpush.msra.mxu0 0.0
    %138 = vmatpush.msra.mxu0 0.0
    %139 = vmatpush.msra.mxu0 %v122
    %140 = vmatpush.msra.mxu0 %v121
    %141 = vmatpush.msra.mxu0 %v120
    %142 = vmatpush.msra.mxu0 %v119
    %143 = vmatmul.f32.gmra.mxu0 %v125
    %v144 = vpop.f32.mrf.mxu0
    %v145 = vadd.f32 0.0, %v144
    %146 = vdwg.mxu0
    %v147 = vadd.f32 %v100, %v145
    %v148 = vxor.u32 %v147, 2147483648
    %v149 = vmul.f32 %v148, 1.442695
    %v150 = vpow.pop %v149
    %v151 = vadd.f32 %v150, 1.0
    %v152 = vrcp.pop %v151
    %v153 = vmul.f32 %v151, %v152
    %v154 = vsub.f32 1.0, %v153
    %v155 = vmul.f32 %v152, %v154
    %v156 = vadd.f32 %v152, %v155
    %vm157 = vweird.f32 %v151
    %vm158 = vweird.f32 %v152
    %vm159 = vmor %vm157, %vm158
    %v160 = vsel %vm159, %v152, %v156
    %v161 = vand.u32 2147483647, %v151
    %vm162 = vcmp.eq.f32.partialorder %v161, 8.507059e+37
    %v163 = vand.u32 %v151, 2147483648
    %v164 = vor.u32 1.1754944e-38, %v163
    %v165 = vsel %vm162, %v164, %v160
    %v166 = vmul.f32 1.0, %v165
    %v167 = vmul.f32 %v166, 2.0
    %v168 = vsub.f32 %v167, 1.0
    %v169 = vmul.f32 %v166, 0.0
    %171 = vrot.lane.b32.xlu0 %v168, 64
    %v172 = vpop.permute.xlu0 %171
    %v174 = vmul.f32 %v166, %v172
    %176 = vrot.lane.b32.xlu0 %v174, 32
    %v177 = vpop.permute.xlu0 %176
    %v179 = vadd.f32 %v169, %v177
    %v180 = vtanh.pop %v179
    %182 = vrot.lane.b32.xlu0 %v180, 64
    %v183 = vpop.permute.xlu0 %182
    %v185 = vmul.f32 %v166, %v183
    %187 = vrot.lane.b32.xlu0 %v185, 32
    %v188 = vpop.permute.xlu0 %187
    %v189 = vsel %vm123, %v188, 0
    %191 = vmatpush.msra.mxu0 0.0
    %192 = vmatpush.msra.mxu0 0.0
    %193 = vmatpush.msra.mxu0 0.0
    %194 = vmatpush.msra.mxu0 0.0
    %195 = vmatpush.msra.mxu0 0.0
    %196 = vmatpush.msra.mxu0 0.0
    %197 = vmatpush.msra.mxu0 0.0
    %198 = vmatpush.msra.mxu0 0.0
    %199 = vmatpush.msra.mxu0 0.0
    %200 = vmatpush.msra.mxu0 0.0
    %201 = vmatpush.msra.mxu0 0.0
    %202 = vmatpush.msra.mxu0 0.0
    %203 = vmatpush.msra.mxu0 %v122
    %204 = vmatpush.msra.mxu0 %v121
    %205 = vmatpush.msra.mxu0 %v120
    %206 = vmatpush.msra.mxu0 %v119
    %207 = vmatmul.f32.gmra.mxu0 %v189
    %v208 = vpop.f32.mrf.mxu0
    %v209 = vadd.f32 0.0, %v208
    %210 = vdwg.mxu0
    %v211 = vadd.f32 %v102, %v209
    %v212 = vxor.u32 %v211, 2147483648
    %v213 = vmul.f32 %v212, 1.442695
    %v214 = vpow.pop %v213
    %v215 = vadd.f32 %v214, 1.0
    %v216 = vrcp.pop %v215
    %v217 = vmul.f32 %v215, %v216
    %v218 = vsub.f32 1.0, %v217
    %v219 = vmul.f32 %v216, %v218
    %v220 = vadd.f32 %v216, %v219
    %vm221 = vweird.f32 %v215
    %vm222 = vweird.f32 %v216
    %vm223 = vmor %vm221, %vm222
    %v224 = vsel %vm223, %v216, %v220
    %v225 = vand.u32 2147483647, %v215
    %vm226 = vcmp.eq.f32.partialorder %v225, 8.507059e+37
    %v227 = vand.u32 %v215, 2147483648
    %v228 = vor.u32 1.1754944e-38, %v227
    %v229 = vsel %vm226, %v228, %v224
    %v230 = vmul.f32 1.0, %v229
    %v231 = vmul.f32 %v230, 2.0
    %v232 = vsub.f32 %v231, 1.0
    %v233 = vmul.f32 %v230, %v179
    %235 = vrot.lane.b32.xlu0 %v232, 64
    %v236 = vpop.permute.xlu0 %235
    %v238 = vmul.f32 %v230, %v236
    %240 = vrot.lane.b32.xlu0 %v238, 32
    %v241 = vpop.permute.xlu0 %240
    %v243 = vadd.f32 %v233, %v241
    %v244 = vtanh.pop %v243
    %246 = vrot.lane.b32.xlu0 %v244, 64
    %v247 = vpop.permute.xlu0 %246
    %v249 = vmul.f32 %v230, %v247
    %251 = vrot.lane.b32.xlu0 %v249, 32
    %v252 = vpop.permute.xlu0 %251
    %v253 = vsel %vm123, %v252, 0
    %255 = vmatpush.msra.mxu0 0.0
    %256 = vmatpush.msra.mxu0 0.0
    %257 = vmatpush.msra.mxu0 0.0
    %258 = vmatpush.msra.mxu0 0.0
    %259 = vmatpush.msra.mxu0 0.0
    %260 = vmatpush.msra.mxu0 0.0
    %261 = vmatpush.msra.mxu0 0.0
    %262 = vmatpush.msra.mxu0 0.0
    %263 = vmatpush.msra.mxu0 0.0
    %264 = vmatpush.msra.mxu0 0.0
    %265 = vmatpush.msra.mxu0 0.0
    %266 = vmatpush.msra.mxu0 0.0
    %267 = vmatpush.msra.mxu0 %v122
    %268 = vmatpush.msra.mxu0 %v121
    %269 = vmatpush.msra.mxu0 %v120
    %270 = vmatpush.msra.mxu0 %v119
    %271 = vmatmul.f32.gmra.mxu0 %v253
    %v272 = vpop.f32.mrf.mxu0
    %v273 = vadd.f32 0.0, %v272
    %274 = vdwg.mxu0
    %v275 = vadd.f32 %v105, %v273
    %v276 = vxor.u32 %v275, 2147483648
    %v277 = vmul.f32 %v276, 1.442695
    %v278 = vpow.pop %v277
    %v279 = vadd.f32 %v278, 1.0
    %v280 = vrcp.pop %v279
    %v281 = vmul.f32 %v279, %v280
    %v282 = vsub.f32 1.0, %v281
    %v283 = vmul.f32 %v280, %v282
    %v284 = vadd.f32 %v280, %v283
    %vm285 = vweird.f32 %v279
    %vm286 = vweird.f32 %v280
    %vm287 = vmor %vm285, %vm286
    %v288 = vsel %vm287, %v280, %v284
    %v289 = vand.u32 2147483647, %v279
    %vm290 = vcmp.eq.f32.partialorder %v289, 8.507059e+37
    %v291 = vand.u32 %v279, 2147483648
    %v292 = vor.u32 1.1754944e-38, %v291
    %v293 = vsel %vm290, %v292, %v288
    %v294 = vmul.f32 1.0, %v293
    %v295 = vmul.f32 %v294, 2.0
    %v296 = vsub.f32 %v295, 1.0
    %v297 = vmul.f32 %v294, %v243
    %299 = vrot.lane.b32.xlu0 %v296, 64
    %v300 = vpop.permute.xlu0 %299
    %v302 = vmul.f32 %v294, %v300
    %304 = vrot.lane.b32.xlu0 %v302, 32
    %v305 = vpop.permute.xlu0 %304
    %v307 = vadd.f32 %v297, %v305
    %v308 = vtanh.pop %v307
    %310 = vrot.lane.b32.xlu0 %v308, 64
    %v311 = vpop.permute.xlu0 %310
    %v313 = vmul.f32 %v294, %v311
    %315 = vrot.lane.b32.xlu0 %v313, 32
    %v316 = vpop.permute.xlu0 %315
    %v317 = vsel %vm123, %v316, 0
    %319 = vmatpush.msra.mxu0 0.0
    %320 = vmatpush.msra.mxu0 0.0
    %321 = vmatpush.msra.mxu0 0.0
    %322 = vmatpush.msra.mxu0 0.0
    %323 = vmatpush.msra.mxu0 0.0
    %324 = vmatpush.msra.mxu0 0.0
    %325 = vmatpush.msra.mxu0 0.0
    %326 = vmatpush.msra.mxu0 0.0
    %327 = vmatpush.msra.mxu0 0.0
    %328 = vmatpush.msra.mxu0 0.0
    %329 = vmatpush.msra.mxu0 0.0
    %330 = vmatpush.msra.mxu0 0.0
    %331 = vmatpush.msra.mxu0 %v122
    %332 = vmatpush.msra.mxu0 %v121
    %333 = vmatpush.msra.mxu0 %v120
    %334 = vmatpush.msra.mxu0 %v119
    %335 = vmatmul.f32.gmra.mxu0 %v317
    %v336 = vpop.f32.mrf.mxu0
    %v337 = vadd.f32 0.0, %v336
    %338 = vdwg.mxu0
    %v339 = vadd.f32 %v107, %v337
    %v340 = vxor.u32 %v339, 2147483648
    %v341 = vmul.f32 %v340, 1.442695
    %v342 = vpow.pop %v341
    %v343 = vadd.f32 %v342, 1.0
    %v344 = vrcp.pop %v343
    %v345 = vmul.f32 %v343, %v344
    %v346 = vsub.f32 1.0, %v345
    %v347 = vmul.f32 %v344, %v346
    %v348 = vadd.f32 %v344, %v347
    %vm349 = vweird.f32 %v343
    %vm350 = vweird.f32 %v344
    %vm351 = vmor %vm349, %vm350
    %v352 = vsel %vm351, %v344, %v348
    %v353 = vand.u32 2147483647, %v343
    %vm354 = vcmp.eq.f32.partialorder %v353, 8.507059e+37
    %v355 = vand.u32 %v343, 2147483648
    %v356 = vor.u32 1.1754944e-38, %v355
    %v357 = vsel %vm354, %v356, %v352
    %v358 = vmul.f32 1.0, %v357
    %v359 = vmul.f32 %v358, 2.0
    %v360 = vsub.f32 %v359, 1.0
    %v361 = vmul.f32 %v358, %v307
    %363 = vrot.lane.b32.xlu0 %v360, 64
    %v364 = vpop.permute.xlu0 %363
    %v366 = vmul.f32 %v358, %v364
    %368 = vrot.lane.b32.xlu0 %v366, 32
    %v369 = vpop.permute.xlu0 %368
    %v371 = vadd.f32 %v361, %v369
    %v372 = vtanh.pop %v371
    %374 = vrot.lane.b32.xlu0 %v372, 64
    %v375 = vpop.permute.xlu0 %374
    %v377 = vmul.f32 %v358, %v375
    %379 = vrot.lane.b32.xlu0 %v377, 32
    %v380 = vpop.permute.xlu0 %379
    %v381 = vsel %vm123, %v380, 0
    %383 = vmatpush.msra.mxu0 0.0
    %384 = vmatpush.msra.mxu0 0.0
    %385 = vmatpush.msra.mxu0 0.0
    %386 = vmatpush.msra.mxu0 0.0
    %387 = vmatpush.msra.mxu0 0.0
    %388 = vmatpush.msra.mxu0 0.0
    %389 = vmatpush.msra.mxu0 0.0
    %390 = vmatpush.msra.mxu0 0.0
    %391 = vmatpush.msra.mxu0 0.0
    %392 = vmatpush.msra.mxu0 0.0
    %393 = vmatpush.msra.mxu0 0.0
    %394 = vmatpush.msra.mxu0 0.0
    %395 = vmatpush.msra.mxu0 %v122
    %396 = vmatpush.msra.mxu0 %v121
    %397 = vmatpush.msra.mxu0 %v120
    %398 = vmatpush.msra.mxu0 %v119
    %399 = vmatmul.f32.gmra.mxu0 %v381
    %v400 = vpop.f32.mrf.mxu0
    %v401 = vadd.f32 0.0, %v400
    %402 = vdwg.mxu0
    %v403 = vadd.f32 %v110, %v401
    %v404 = vxor.u32 %v403, 2147483648
    %v405 = vmul.f32 %v404, 1.442695
    %v406 = vpow.pop %v405
    %v407 = vadd.f32 %v406, 1.0
    %v408 = vrcp.pop %v407
    %v409 = vmul.f32 %v407, %v408
    %v410 = vsub.f32 1.0, %v409
    %v411 = vmul.f32 %v408, %v410
    %v412 = vadd.f32 %v408, %v411
    %vm413 = vweird.f32 %v407
    %vm414 = vweird.f32 %v408
    %vm415 = vmor %vm413, %vm414
    %v416 = vsel %vm415, %v408, %v412
    %v417 = vand.u32 2147483647, %v407
    %vm418 = vcmp.eq.f32.partialorder %v417, 8.507059e+37
    %v419 = vand.u32 %v407, 2147483648
    %v420 = vor.u32 1.1754944e-38, %v419
    %v421 = vsel %vm418, %v420, %v416
    %v422 = vmul.f32 1.0, %v421
    %v423 = vmul.f32 %v422, 2.0
    %v424 = vsub.f32 %v423, 1.0
    %v425 = vmul.f32 %v422, %v371
    %427 = vrot.lane.b32.xlu0 %v424, 64
    %v428 = vpop.permute.xlu0 %427
    %v430 = vmul.f32 %v422, %v428
    %432 = vrot.lane.b32.xlu0 %v430, 32
    %v433 = vpop.permute.xlu0 %432
    %v435 = vadd.f32 %v425, %v433
    %v436 = vtanh.pop %v435
    %438 = vrot.lane.b32.xlu0 %v436, 64
    %v439 = vpop.permute.xlu0 %438
    %v441 = vmul.f32 %v422, %v439
    %443 = vrot.lane.b32.xlu0 %v441, 32
    %v444 = vpop.permute.xlu0 %443
    %v445 = vsel %vm123, %v444, 0
    %447 = vmatpush.msra.mxu0 0.0
    %448 = vmatpush.msra.mxu0 0.0
    %449 = vmatpush.msra.mxu0 0.0
    %450 = vmatpush.msra.mxu0 0.0
    %451 = vmatpush.msra.mxu0 0.0
    %452 = vmatpush.msra.mxu0 0.0
    %453 = vmatpush.msra.mxu0 0.0
    %454 = vmatpush.msra.mxu0 0.0
    %455 = vmatpush.msra.mxu0 0.0
    %456 = vmatpush.msra.mxu0 0.0
    %457 = vmatpush.msra.mxu0 0.0
    %458 = vmatpush.msra.mxu0 0.0
    %459 = vmatpush.msra.mxu0 %v122
    %460 = vmatpush.msra.mxu0 %v121
    %461 = vmatpush.msra.mxu0 %v120
    %462 = vmatpush.msra.mxu0 %v119
    %463 = vmatmul.f32.gmra.mxu0 %v445
    %v464 = vpop.f32.mrf.mxu0
    %v465 = vadd.f32 0.0, %v464
    %466 = vdwg.mxu0
    %v467 = vadd.f32 %v112, %v465
    %v468 = vxor.u32 %v467, 2147483648
    %v469 = vmul.f32 %v468, 1.442695
    %v470 = vpow.pop %v469
    %v471 = vadd.f32 %v470, 1.0
    %v472 = vrcp.pop %v471
    %v473 = vmul.f32 %v471, %v472
    %v474 = vsub.f32 1.0, %v473
    %v475 = vmul.f32 %v472, %v474
    %v476 = vadd.f32 %v472, %v475
    %vm477 = vweird.f32 %v471
    %vm478 = vweird.f32 %v472
    %vm479 = vmor %vm477, %vm478
    %v480 = vsel %vm479, %v472, %v476
    %v481 = vand.u32 2147483647, %v471
    %vm482 = vcmp.eq.f32.partialorder %v481, 8.507059e+37
    %v483 = vand.u32 %v471, 2147483648
    %v484 = vor.u32 1.1754944e-38, %v483
    %v485 = vsel %vm482, %v484, %v480
    %v486 = vmul.f32 1.0, %v485
    %v487 = vmul.f32 %v486, 2.0
    %v488 = vsub.f32 %v487, 1.0
    %v489 = vmul.f32 %v486, %v435
    %491 = vrot.lane.b32.xlu0 %v488, 64
    %v492 = vpop.permute.xlu0 %491
    %v494 = vmul.f32 %v486, %v492
    %496 = vrot.lane.b32.xlu0 %v494, 32
    %v497 = vpop.permute.xlu0 %496
    %v499 = vadd.f32 %v489, %v497
    %v500 = vtanh.pop %v499
    %502 = vrot.lane.b32.xlu0 %v500, 64
    %v503 = vpop.permute.xlu0 %502
    %v505 = vmul.f32 %v486, %v503
    %507 = vrot.lane.b32.xlu0 %v505, 32
    %v508 = vpop.permute.xlu0 %507
    %v509 = vsel %vm123, %v508, 0
    %511 = vmatpush.msra.mxu0 0.0
    %512 = vmatpush.msra.mxu0 0.0
    %513 = vmatpush.msra.mxu0 0.0
    %514 = vmatpush.msra.mxu0 0.0
    %515 = vmatpush.msra.mxu0 0.0
    %516 = vmatpush.msra.mxu0 0.0
    %517 = vmatpush.msra.mxu0 0.0
    %518 = vmatpush.msra.mxu0 0.0
    %519 = vmatpush.msra.mxu0 0.0
    %520 = vmatpush.msra.mxu0 0.0
    %521 = vmatpush.msra.mxu0 0.0
    %522 = vmatpush.msra.mxu0 0.0
    %523 = vmatpush.msra.mxu0 %v122
    %524 = vmatpush.msra.mxu0 %v121
    %525 = vmatpush.msra.mxu0 %v120
    %526 = vmatpush.msra.mxu0 %v119
    %527 = vmatmul.f32.gmra.mxu0 %v509
    %v528 = vpop.f32.mrf.mxu0
    %v529 = vadd.f32 0.0, %v528
    %530 = vdwg.mxu0
    %v531 = vadd.f32 %v115, %v529
    %v532 = vxor.u32 %v531, 2147483648
    %v533 = vmul.f32 %v532, 1.442695
    %v534 = vpow.pop %v533
    %v535 = vadd.f32 %v534, 1.0
    %v536 = vrcp.pop %v535
    %v537 = vmul.f32 %v535, %v536
    %v538 = vsub.f32 1.0, %v537
    %v539 = vmul.f32 %v536, %v538
    %v540 = vadd.f32 %v536, %v539
    %vm541 = vweird.f32 %v535
    %vm542 = vweird.f32 %v536
    %vm543 = vmor %vm541, %vm542
    %v544 = vsel %vm543, %v536, %v540
    %v545 = vand.u32 2147483647, %v535
    %vm546 = vcmp.eq.f32.partialorder %v545, 8.507059e+37
    %v547 = vand.u32 %v535, 2147483648
    %v548 = vor.u32 1.1754944e-38, %v547
    %v549 = vsel %vm546, %v548, %v544
    %v550 = vmul.f32 1.0, %v549
    %v551 = vmul.f32 %v550, 2.0
    %v552 = vsub.f32 %v551, 1.0
    %v553 = vmul.f32 %v550, %v499
    %555 = vrot.lane.b32.xlu0 %v552, 64
    %v556 = vpop.permute.xlu0 %555
    %v558 = vmul.f32 %v550, %v556
    %560 = vrot.lane.b32.xlu0 %v558, 32
    %v561 = vpop.permute.xlu0 %560
    %v563 = vadd.f32 %v553, %v561
    %v564 = vtanh.pop %v563
    %566 = vrot.lane.b32.xlu0 %v564, 64
    %v567 = vpop.permute.xlu0 %566
    %v569 = vmul.f32 %v550, %v567
    %571 = vrot.lane.b32.xlu0 %v569, 32
    %v572 = vpop.permute.xlu0 %571
    %v573 = vsel %vm123, %v572, 0
    %575 = vmatpush.msra.mxu0 0.0
    %576 = vmatpush.msra.mxu0 0.0
    %577 = vmatpush.msra.mxu0 0.0
    %578 = vmatpush.msra.mxu0 0.0
    %579 = vmatpush.msra.mxu0 0.0
    %580 = vmatpush.msra.mxu0 0.0
    %581 = vmatpush.msra.mxu0 0.0
    %582 = vmatpush.msra.mxu0 0.0
    %583 = vmatpush.msra.mxu0 0.0
    %584 = vmatpush.msra.mxu0 0.0
    %585 = vmatpush.msra.mxu0 0.0
    %586 = vmatpush.msra.mxu0 0.0
    %587 = vmatpush.msra.mxu0 %v122
    %588 = vmatpush.msra.mxu0 %v121
    %589 = vmatpush.msra.mxu0 %v120
    %590 = vmatpush.msra.mxu0 %v119
    %591 = vmatmul.f32.gmra.mxu0 %v573
    %v592 = vpop.f32.mrf.mxu0
    %v593 = vadd.f32 0.0, %v592
    %594 = vdwg.mxu0
    %v595 = vadd.f32 %v117, %v593
    %v596 = vxor.u32 %v595, 2147483648
    %v597 = vmul.f32 %v596, 1.442695
    %v598 = vpow.pop %v597
    %v599 = vadd.f32 %v598, 1.0
    %v600 = vrcp.pop %v599
    %v601 = vmul.f32 %v599, %v600
    %v602 = vsub.f32 1.0, %v601
    %v603 = vmul.f32 %v600, %v602
    %v604 = vadd.f32 %v600, %v603
    %vm605 = vweird.f32 %v599
    %vm606 = vweird.f32 %v600
    %vm607 = vmor %vm605, %vm606
    %v608 = vsel %vm607, %v600, %v604
    %v609 = vand.u32 2147483647, %v599
    %vm610 = vcmp.eq.f32.partialorder %v609, 8.507059e+37
    %v611 = vand.u32 %v599, 2147483648
    %v612 = vor.u32 1.1754944e-38, %v611
    %v613 = vsel %vm610, %v612, %v608
    %v614 = vmul.f32 1.0, %v613
    %v615 = vmul.f32 %v614, 2.0
    %v616 = vsub.f32 %v615, 1.0
    %v617 = vmul.f32 %v614, %v563
    %619 = vrot.lane.b32.xlu0 %v616, 64
    %v620 = vpop.permute.xlu0 %619
    %v622 = vmul.f32 %v614, %v620
    %624 = vrot.lane.b32.xlu0 %v622, 32
    %v625 = vpop.permute.xlu0 %624
    %v627 = vadd.f32 %v617, %v625
    %v628 = vtanh.pop %v627
    %630 = vrot.lane.b32.xlu0 %v628, 64
    %v631 = vpop.permute.xlu0 %630
    %v633 = vmul.f32 %v614, %v631
    %635 = vrot.lane.b32.xlu0 %v633, 32
    %v636 = vpop.permute.xlu0 %635
    %v638 = vsel %vm123, %v636, 0.0
    %639 = vst [vmem:[#allocation6] sm:$0xff] %v638
    %v640 = vpack.c.bf16 %v633, %v633
    %v641 = vld [vmem:[#allocation2] sm:$0xf]
    %v642 = vld [vmem:[#allocation2 + $0x4] sm:$0xf]
    %v643 = vld [vmem:[#allocation2 + $0x8] sm:$0xf]
    %v644 = vld [vmem:[#allocation2 + $0xc] sm:$0xf]
    %v645 = vld [vmem:[%s4] sm:$0x1]
    %v647 = vperm.slane %v645, 0
    %650 = vrot.lane.b32.xlu0 %v640, 32
    %v651 = vpop.permute.xlu0 %650
    %v656 = vunpack.c.l.b16 %v641
    %v657 = vunpack.c.l.b16 %v642
    %v658 = vunpack.c.l.b16 %v643
    %v659 = vunpack.c.l.b16 %v644
    %v660 = vpack.c.b16 %v657, %v656
    %v661 = vpack.c.b16 %v659, %v658
    %v665 = vsel %vm123, %v651, 0
    %667 = vmatpush.bf16.msra.mxu0 0
    %668 = vmatpush.bf16.msra.mxu0 0
    %669 = vmatpush.bf16.msra.mxu0 0
    %670 = vmatpush.bf16.msra.mxu0 0
    %671 = vmatpush.bf16.msra.mxu0 0
    %672 = vmatpush.bf16.msra.mxu0 0
    %673 = vmatpush.bf16.msra.mxu0 %v661
    %674 = vmatpush.bf16.msra.mxu0 %v660
    %675 = vmatmul.bf16.gmra.mxu0 %v665
    %v676 = vpop.f32.mrf.mxu0
    %v677 = vadd.f32 %v647, %v676
    %v678 = vpop.f32.mrf.mxu0
    %679 = vdwg.mxu0
    %680 = vst [vmem:[#allocation5] sm:$0xff] %v677
    // Predicated region
    $region26: #{tpu_custom_call.1} parent=1 // pred_check
      _
    $region27: #{tpu_custom_call.1} parent=1 // pred_check_branch
      %682 = sbr.rel (0) target = $region29
    $region28: #{tpu_custom_call.1} parent=1 // pred_region
      %684 = vsyncadd [#allocation4], 0
      %s686 = sshll.u32 [#allocation5], 4
      %s687 = int_to_ptr.vmem [resolvable:$true] %s686
      %s688 = sshll.u32 %s5, 4
      %s689 = int_to_ptr.hbm [resolvable:$true] %s688
      %691 = dma.vmem_to_hbm [thread:$0]  %s687, 128, %s689, [#allocation4]
    $region29: #{tpu_custom_call.1} parent=1 // pred_fallthru
      _
    // Predicated region
    $region30: #{tpu_custom_call.1} parent=1 // pred_check
      _
    $region31: #{tpu_custom_call.1} parent=1 // pred_check_branch
      %693 = sbr.rel (0) target = $region33
    $region32: #{tpu_custom_call.1} parent=1 // pred_region
      %695 = vsyncadd [#allocation7], 0
      %s697 = sshll.u32 [#allocation6], 4
      %s698 = int_to_ptr.vmem [resolvable:$true] %s697
      %s699 = sshll.u32 %s6, 4
      %s700 = int_to_ptr.hbm [resolvable:$true] %s699
      %702 = dma.vmem_to_hbm [thread:$0]  %s698, 128, %s700, [#allocation7]
    $region33: #{tpu_custom_call.1} parent=1 // pred_fallthru
      _
    // Predicated region
    $region34: #{tpu_custom_call.1} parent=1 // pred_check
      _
    $region35: #{tpu_custom_call.1} parent=1 // pred_check_branch
      %704 = sbr.rel (0) target = $region37
    $region36: #{tpu_custom_call.1} parent=1 // pred_region
      %706 = dma.done [#allocation4], 128
    $region37: #{tpu_custom_call.1} parent=1 // pred_fallthru
      _
    // Predicated region
    $region38: #{tpu_custom_call.1} parent=1 // pred_check
      _
    $region39: #{tpu_custom_call.1} parent=1 // pred_check_branch
      %708 = sbr.rel (0) target = $region41
    $region40: #{tpu_custom_call.1} parent=1 // pred_region
      %710 = dma.done [#allocation7], 128
    $region41: #{tpu_custom_call.1} parent=1 // pred_fallthru
      _
    %711 = vsyncpa [#allocation3], 1
    %712 = vsyncpa [#allocation4], 1
    %713 = vsyncpa [#allocation7], 1

</llo_original>
